<compile_context>
chip_gen: v5e
topology: v5e:2x2
jax: 0.10.0
libtpu: 0.0.40
codegen_flags: <defaults>
</compile_context>

<pallas_src>
import jax
import jax.numpy as jnp
from jax import lax
from jax.experimental import pallas as pl
from jax.experimental.pallas import tpu as pltpu


def _round_up(x, m):
    return ((x + m - 1) // m) * m


def _fused_gather_kernel(idx_ref, tbl_ref, o_ref):
    """One row-tile of the fused embedding->linear->relu lookup.

    idx_ref: (TMp, P)    int32  indices of the P original rows packed per output row
    tbl_ref: (P*V, P*N)  bf16   block-diagonal fused table (VMEM-resident, fetched once)
    o_ref:   (TMp, P*N)  f32    lane-dense output tile
    """
    tmp, p = idx_ref.shape
    pv = tbl_ref.shape[0]
    v = pv // p

    idx = idx_ref[...]                                        # (TMp, P) int32
    col = lax.broadcasted_iota(jnp.int32, (tmp, pv), 1)       # (TMp, P*V)

    # onehot[r, j*V + idx[r, j]] = 1 for every slot j.  Slots land in disjoint
    # column blocks of the block-diagonal table, so hits never interfere.
    # NOTE: out-of-range indices yield undefined rows (PyTorch would raise).
    hit = col == idx[:, 0:1]
    for j in range(1, p):
        hit = jnp.logical_or(hit, col == (idx[:, j:j + 1] + j * v))
    onehot = hit.astype(jnp.bfloat16)                         # (TMp, P*V)

    # Gather as an MXU matmul: each output lane gets exactly one 1.0 * bf16
    # product accumulated in f32, so the lookup is exact.
    o_ref[...] = jnp.dot(onehot, tbl_ref[...],
                         preferred_element_type=jnp.float32)  # (TMp, P*N) f32


def element_encoder_pallas(idx, big_table_bf16, n_out, *, tm_max=2048):
    """idx: (M,) int32; big_table: (P*V, P*n_out) bf16 block-diagonal fused table.

    Returns relu(linear(embedding(idx))) as (M, n_out) float32 (values taken from
    the bf16-stored fused table).
    """
    (M,) = idx.shape
    pv, pn = big_table_bf16.shape
    P = pn // n_out
    assert pn == P * n_out

    row_align = 8 * P                      # keeps the (TM/P) sublane dim a multiple of 8
    TM = min(_round_up(tm_max, row_align), _round_up(M, row_align))
    num_tiles = pl.cdiv(M, TM)
    if num_tiles == 1 and M > row_align:
        # Prefer >= 2 grid steps: lets "parallel" shard across v7x's two
        # TensorCores and gives the DMA pipeline something to overlap.
        TM = _round_up((M + 1) // 2, row_align)
        num_tiles = pl.cdiv(M, TM)
    M_pad = num_tiles * TM
    if M_pad != M:
        idx = jnp.pad(idx, (0, M_pad - M))   # pad with valid index 0; sliced off below

    idx_pack = idx.reshape(M_pad // P, P)    # free metadata reshape
    TMp = TM // P

    out_packed = pl.pallas_call(
        _fused_gather_kernel,
        out_shape=jax.ShapeDtypeStruct((M_pad // P, pn), jnp.float32),
        grid_spec=pltpu.PrefetchScalarGridSpec(
            num_scalar_prefetch=0,
            grid=(num_tiles,),
            in_specs=[
                pl.BlockSpec((TMp, P), lambda i: (i, 0)),   # packed indices: tiled over rows
                pl.BlockSpec((pv, pn), lambda i: (0, 0)),   # fused table: VMEM-resident
            ],
            out_specs=pl.BlockSpec((TMp, pn), lambda i: (i, 0)),  # lane-dense output
        ),
        compiler_params=pltpu.CompilerParams(
            dimension_semantics=("parallel",),              # megacore sharding on v7x
            vmem_limit_bytes=32 * 1024 * 1024,
        ),
    )(idx_pack, big_table_bf16)

    out = out_packed.reshape(M_pad, n_out)   # free: (M/P, P*N) and (M, N) share row-major layout
    return out[:M] if M_pad != M else out


class ElementEncoderPallas:
    """JAX/Pallas port of:
        forward(element) = relu(linear(embedding(element)))

    embedding table, linear weight, bias and ReLU are folded offline (in f32) into
    a single fused lookup table; the kernel is one lane-dense MXU gather.
    """

    def __init__(self, num_embeddings, embedding_dim, linear_input_dim,
                 linear_output_dim, key):
        assert linear_input_dim == embedding_dim
        k_emb, k_w, k_b = jax.random.split(key, 3)
        # nn.Embedding default init: N(0, 1)
        table = jax.random.normal(
            k_emb, (num_embeddings, embedding_dim), dtype=jnp.float32)
        # nn.Linear default init: U(-1/sqrt(in), 1/sqrt(in)) for W and b
        bound = 1.0 / (linear_input_dim ** 0.5)
        w = jax.random.uniform(
            k_w, (linear_output_dim, linear_input_dim),
            minval=-bound, maxval=bound, dtype=jnp.float32)
        b = jax.random.uniform(
            k_b, (linear_output_dim,),
            minval=-bound, maxval=bound, dtype=jnp.float32)

        self.embedding_table = table          # f32 params kept for reference
        self.weight = w
        self.bias = b
        self.out_dim = linear_output_dim

        # Fold embedding -> linear -> bias -> relu offline in f32 (one (V, N) table),
        # then store bf16 for the MXU.  Only one bf16 rounding in the whole pipeline.
        fused = jnp.maximum(table @ w.T + b, 0.0)             # (V, N) f32
        self.fused_rows_bf16 = fused.astype(jnp.bfloat16)     # (V, N) bf16

        # Lane-dense packing factor: P consecutive output rows share one 128-lane row.
        n = linear_output_dim
        self.pack = 128 // n if (n <= 128 and 128 % n == 0) else 1
        # Block-diagonal replicated table (P*V, P*N), built once at init.
        self.big_table = jnp.kron(
            jnp.eye(self.pack, dtype=jnp.float32), fused).astype(jnp.bfloat16)

    def __call__(self, element):
        # element: integer indices of arbitrary shape, e.g. (batch, seq)
        lead_shape = element.shape
        idx = element.reshape(-1).astype(jnp.int32)
        y2d = element_encoder_pallas(idx, self.big_table, self.out_dim)
        return y2d.reshape(*lead_shape, self.out_dim)


if __name__ == "__main__":
    key = jax.random.PRNGKey(0)
    k_model, k_idx = jax.random.split(key)

    num_embeddings = 64
    embedding_dim = 32
    linear_output_dim = 32
    batch, seq = 2, 8

    model = ElementEncoderPallas(
        num_embeddings=num_embeddings,
        embedding_dim=embedding_dim,
        linear_input_dim=embedding_dim,
        linear_output_dim=linear_output_dim,
        key=k_model,
    )

    element = jax.random.randint(
        k_idx, (batch, seq), minval=0, maxval=num_embeddings, dtype=jnp.int32)

    out = model(element)
    jax.block_until_ready(out)

    assert out.shape == (batch, seq, linear_output_dim)
    assert out.dtype == jnp.float32

    # Exact reference: the kernel is a pure gather of the bf16 fused rows.
    ref_exact = jnp.take(model.fused_rows_bf16.astype(jnp.float32), element, axis=0)
    assert jnp.allclose(out, ref_exact, atol=1e-5, rtol=1e-6), "gather mismatch"

    # Loose reference: full f32 relu(linear(embedding(.))) (PyTorch semantics);
    # the only difference is the single bf16 rounding of the folded table.
    emb = jnp.take(model.embedding_table, element, axis=0)
    ref_f32 = jnp.maximum(emb @ model.weight.T + model.bias, 0.0)
    assert jnp.allclose(out, ref_f32, atol=2e-2, rtol=2e-2), "mismatch vs f32 reference"

    print("KERNEL_OK")
</pallas_src>

<mosaic_0001>
module attributes {stable_mosaic.version = 11 : i64} {
  func.func @_fused_gather_kernel(%arg0: i32, %arg1: memref<8x4xi32, #tpu.memory_space<vmem>>, %arg2: memref<256x128xbf16, #tpu.memory_space<vmem>>, %arg3: memref<8x128xf32, #tpu.memory_space<vmem>>) attributes {dimension_semantics = [#tpu.dimension_semantics<parallel>], iteration_bounds = array<i64: 1>, scalar_prefetch = 0 : i64, scratch_operands = 0 : i64, tpu.core_type = #tpu.core_type<tc>, window_params = [{transform_indices = @transform_0, window_bounds = array<i64: 8, 4>}, {pipeline_mode = #tpu.pipeline_mode<synchronous>, transform_indices = @transform_1, window_bounds = array<i64: 256, 128>}, {transform_indices = @transform_2, window_bounds = array<i64: 8, 128>}]} {
    %c0 = arith.constant 0 : index
    %c0_0 = arith.constant 0 : index
    %0 = vector.load %arg1[%c0, %c0_0] : memref<8x4xi32, #tpu.memory_space<vmem>>, vector<8x4xi32>
    %1 = tpu.iota {dimensions = array<i32: 1>} : vector<8x256xi32>
    %2 = vector.extract_strided_slice %0 {offsets = [0, 0], sizes = [8, 1], strides = [1, 1]} : vector<8x4xi32> to vector<8x1xi32>
    %3 = vector.broadcast %2 : vector<8x1xi32> to vector<8x256xi32>
    %4 = arith.cmpi eq, %1, %3 : vector<8x256xi32>
    %5 = vector.extract_strided_slice %0 {offsets = [0, 1], sizes = [8, 1], strides = [1, 1]} : vector<8x4xi32> to vector<8x1xi32>
    %c64_i32 = arith.constant 64 : i32
    %6 = vector.broadcast %c64_i32 : i32 to vector<8x1xi32>
    %7 = arith.addi %5, %6 : vector<8x1xi32>
    %8 = vector.broadcast %7 : vector<8x1xi32> to vector<8x256xi32>
    %9 = arith.cmpi eq, %1, %8 : vector<8x256xi32>
    %10 = arith.ori %4, %9 : vector<8x256xi1>
    %11 = vector.extract_strided_slice %0 {offsets = [0, 2], sizes = [8, 1], strides = [1, 1]} : vector<8x4xi32> to vector<8x1xi32>
    %c128_i32 = arith.constant 128 : i32
    %12 = vector.broadcast %c128_i32 : i32 to vector<8x1xi32>
    %13 = arith.addi %11, %12 : vector<8x1xi32>
    %14 = vector.broadcast %13 : vector<8x1xi32> to vector<8x256xi32>
    %15 = arith.cmpi eq, %1, %14 : vector<8x256xi32>
    %16 = arith.ori %10, %15 : vector<8x256xi1>
    %17 = vector.extract_strided_slice %0 {offsets = [0, 3], sizes = [8, 1], strides = [1, 1]} : vector<8x4xi32> to vector<8x1xi32>
    %c192_i32 = arith.constant 192 : i32
    %18 = vector.broadcast %c192_i32 : i32 to vector<8x1xi32>
    %19 = arith.addi %17, %18 : vector<8x1xi32>
    %20 = vector.broadcast %19 : vector<8x1xi32> to vector<8x256xi32>
    %21 = arith.cmpi eq, %1, %20 : vector<8x256xi32>
    %22 = arith.ori %16, %21 : vector<8x256xi1>
    %23 = arith.extui %22 : vector<8x256xi1> to vector<8x256xi32>
    %24 = arith.sitofp %23 : vector<8x256xi32> to vector<8x256xf32>
    %25 = arith.truncf %24 : vector<8x256xf32> to vector<8x256xbf16>
    %c0_1 = arith.constant 0 : index
    %c0_2 = arith.constant 0 : index
    %26 = vector.load %arg2[%c0_1, %c0_2] : memref<256x128xbf16, #tpu.memory_space<vmem>>, vector<256x128xbf16>
    %cst = arith.constant dense<0.000000e+00> : vector<8x128xf32>
    %27 = tpu.matmul %25, %26, %cst {dimension_numbers = #tpu.dot_dimension_numbers<[1], [0], [0], [1], [0, 0, 1, 1], [], []>} : vector<8x256xbf16>, vector<256x128xbf16>, vector<8x128xf32> -> vector<8x128xf32>
    %c0_3 = arith.constant 0 : index
    %c0_4 = arith.constant 0 : index
    %28 = vector.load %arg3[%c0_3, %c0_4] : memref<8x128xf32, #tpu.memory_space<vmem>>, vector<8x128xf32>
    tpu.vector_store %arg3[%c0_3, %c0_4], %27 {strides = array<i32>} : memref<8x128xf32, #tpu.memory_space<vmem>>, vector<8x128xf32>,
    return
  }
  func.func @transform_0(%arg0: i32) -> (i32, i32) {
    %c0_i32 = arith.constant 0 : i32
    %c0_i32_0 = arith.constant 0 : i32
    return %arg0, %c0_i32 : i32, i32
  }
  func.func @transform_1(%arg0: i32) -> (i32, i32) {
    %c0_i32 = arith.constant 0 : i32
    %c0_i32_0 = arith.constant 0 : i32
    %c0_i32_1 = arith.constant 0 : i32
    return %c0_i32, %c0_i32_0 : i32, i32
  }
  func.func @transform_2(%arg0: i32) -> (i32, i32) {
    %c0_i32 = arith.constant 0 : i32
    %c0_i32_0 = arith.constant 0 : i32
    return %arg0, %c0_i32 : i32, i32
  }
}

</mosaic_0001>

<llo_original>
// kernel: tpu_custom_call.1
$region0: #{tpu_custom_call.1}
  #allocation0 [shape = 'u32[]', space=smem, size = 0x4, offset = 0x4, fixed_abs, tag = 'smem constant byte address 0x4 - core index']
  #allocation1 [shape = 'u32[72,128]{1,0:T(1,128)}', space=vmem, size = 0x9000, scoped, tag = 'internal scratch']
  %s0 = inlined_call_operand.vmem [shape: s32[8,4], index: 0, kind: input, shape index: {}]
  %s1 = inlined_call_operand.hbm [shape: bf16[256,128], index: 1, kind: input, shape index: {}]
  %s2 = inlined_call_operand.hbm [shape: f32[8,128], index: 2, kind: output, shape index: {}]
  %s3 = sld [smem:[#allocation0]]
  $region22: #{tpu_custom_call.1} parent=0
    _
  %s5 = ssub.s32 1, %s3
  %s6 = scalar_select 0, %s5, %s3
  $region1: #{tpu_custom_call.1} parent=0
    #allocation2 [shape = 'u8[65536]{0}', space=vmem, size = 0x10000, scoped, tag = 'input window, operand 1, single buffered']
    #allocation3 [shape = 's32[1]{0}', space=sflag, size = 0x4, scoped, tag = 'scoped memory for tpu_custom_call.1']
    #allocation4 [shape = 's32[1]{0}', space=sflag, size = 0x4, scoped, tag = 'scoped memory for tpu_custom_call.1']
    #allocation5 [shape = 'u8[4096]{0}', space=vmem, size = 0x1000, scoped, tag = 'output window, operand 0, single buffered']
    %7 = vsyncpa [#allocation3], 0
    %8 = vsyncpa [#allocation4], 0
    // Predicated region
    $region2: #{tpu_custom_call.1} parent=1 // pred_check
      _
    $region3: #{tpu_custom_call.1} parent=1 // pred_check_branch
      %10 = sbr.rel (0) target = $region5
    $region4: #{tpu_custom_call.1} parent=1 // pred_region
      _
    $region5: #{tpu_custom_call.1} parent=1 // pred_fallthru
      _
    // Predicated region
    $region6: #{tpu_custom_call.1} parent=1 // pred_check
      _
    $region7: #{tpu_custom_call.1} parent=1 // pred_check_branch
      %12 = sbr.rel (0) target = $region9
    $region8: #{tpu_custom_call.1} parent=1 // pred_region
      %14 = vsyncadd [#allocation3], 0
      %s15 = sshll.u32 %s1, 4
      %s16 = int_to_ptr.hbm [resolvable:$true] %s15
      %s17 = sshll.u32 [#allocation2], 4
      %s18 = int_to_ptr.vmem [resolvable:$true] %s17
      %23 = dma.hbm_to_vmem [thread:$0]  %s16, 2048, %s18, [#allocation3], 64, 64, 4
    $region9: #{tpu_custom_call.1} parent=1 // pred_fallthru
      _
    // Predicated region
    $region10: #{tpu_custom_call.1} parent=1 // pred_check
      _
    $region11: #{tpu_custom_call.1} parent=1 // pred_check_branch
      %25 = sbr.rel (0) target = $region13
    $region12: #{tpu_custom_call.1} parent=1 // pred_region
      %27 = dma.done [#allocation3], 2048
    $region13: #{tpu_custom_call.1} parent=1 // pred_fallthru
      _
    %v28 = vld [vmem:[%s0] sm:$0xff]
    %v29 = vlaneseq
    %v30 = vand.u32 %v29, 127
    %v31 = vadd.s32 %v30, 128
    %32 = vset.pattern.permute.xlu0 0
    %33 = vperm.xlu0 %32, %v28
    %v34 = vpop.permute.xlu0 %33
    %vm35 = vcmp.eq.s32.totalorder %v30, %v34
    %vm36 = vcmp.eq.s32.totalorder %v31, %v34
    %v37 = vadd.s32 %v28, 64
    %38 = vset.pattern.permute.xlu0 1
    %39 = vperm.xlu0 %38, %v37
    %v40 = vpop.permute.xlu0 %39
    %vm41 = vcmp.eq.s32.totalorder %v30, %v40
    %vm42 = vcmp.eq.s32.totalorder %v31, %v40
    %vm43 = vmor %vm35, %vm41
    %vm44 = vmor %vm36, %vm42
    %v45 = vadd.s32 %v28, 128
    %46 = vset.pattern.permute.xlu0 2
    %47 = vperm.xlu0 %46, %v45
    %v48 = vpop.permute.xlu0 %47
    %vm49 = vcmp.eq.s32.totalorder %v30, %v48
    %vm50 = vcmp.eq.s32.totalorder %v31, %v48
    %vm51 = vmor %vm43, %vm49
    %vm52 = vmor %vm44, %vm50
    %v53 = vadd.s32 %v28, 192
    %54 = vset.pattern.permute.xlu0 3
    %55 = vperm.xlu0 %54, %v53
    %v56 = vpop.permute.xlu0 %55
    %vm57 = vcmp.eq.s32.totalorder %v30, %v56
    %vm58 = vcmp.eq.s32.totalorder %v31, %v56
    %vm59 = vmor %vm51, %vm57
    %vm60 = vmor %vm52, %vm58
    %v61 = vsel %vm59, 1, 0
    %v62 = vsel %vm60, 1, 0
    %v63 = vcvt.s32.f32 %v61
    %v64 = vcvt.s32.f32 %v62
    %v65 = vpack.c.bf16 %v63, %v63
    %v66 = vpack.c.bf16 %v64, %v64
    %v67 = vld [vmem:[#allocation2] sm:$0xf]
    %v68 = vld [vmem:[#allocation2 + $0x4] sm:$0xf]
    %v69 = vld [vmem:[#allocation2 + $0x8] sm:$0xf]
    %v70 = vld [vmem:[#allocation2 + $0xc] sm:$0xf]
    %v71 = vld [vmem:[#allocation2 + $0x10] sm:$0xf]
    %v72 = vld [vmem:[#allocation2 + $0x14] sm:$0xf]
    %v73 = vld [vmem:[#allocation2 + $0x18] sm:$0xf]
    %v74 = vld [vmem:[#allocation2 + $0x1c] sm:$0xf]
    %v75 = vld [vmem:[#allocation2 + $0x20] sm:$0xf]
    %v76 = vld [vmem:[#allocation2 + $0x24] sm:$0xf]
    %v77 = vld [vmem:[#allocation2 + $0x28] sm:$0xf]
    %v78 = vld [vmem:[#allocation2 + $0x2c] sm:$0xf]
    %v79 = vld [vmem:[#allocation2 + $0x30] sm:$0xf]
    %v80 = vld [vmem:[#allocation2 + $0x34] sm:$0xf]
    %v81 = vld [vmem:[#allocation2 + $0x38] sm:$0xf]
    %v82 = vld [vmem:[#allocation2 + $0x3c] sm:$0xf]
    %v83 = vld [vmem:[#allocation2 + $0x40] sm:$0xf]
    %v84 = vld [vmem:[#allocation2 + $0x44] sm:$0xf]
    %v85 = vld [vmem:[#allocation2 + $0x48] sm:$0xf]
    %v86 = vld [vmem:[#allocation2 + $0x4c] sm:$0xf]
    %v87 = vld [vmem:[#allocation2 + $0x50] sm:$0xf]
    %v88 = vld [vmem:[#allocation2 + $0x54] sm:$0xf]
    %v89 = vld [vmem:[#allocation2 + $0x58] sm:$0xf]
    %v90 = vld [vmem:[#allocation2 + $0x5c] sm:$0xf]
    %v91 = vld [vmem:[#allocation2 + $0x60] sm:$0xf]
    %v92 = vld [vmem:[#allocation2 + $0x64] sm:$0xf]
    %v93 = vld [vmem:[#allocation2 + $0x68] sm:$0xf]
    %v94 = vld [vmem:[#allocation2 + $0x6c] sm:$0xf]
    %v95 = vld [vmem:[#allocation2 + $0x70] sm:$0xf]
    %v96 = vld [vmem:[#allocation2 + $0x74] sm:$0xf]
    %v97 = vld [vmem:[#allocation2 + $0x78] sm:$0xf]
    %v98 = vld [vmem:[#allocation2 + $0x7c] sm:$0xf]
    %v131 = vunpack.c.l.b16 %v67
    %v132 = vunpack.c.l.b16 %v68
    %v133 = vunpack.c.l.b16 %v69
    %v134 = vunpack.c.l.b16 %v70
    %v135 = vunpack.c.l.b16 %v71
    %v136 = vunpack.c.l.b16 %v72
    %v137 = vunpack.c.l.b16 %v73
    %v138 = vunpack.c.l.b16 %v74
    %v139 = vunpack.c.l.b16 %v75
    %v140 = vunpack.c.l.b16 %v76
    %v141 = vunpack.c.l.b16 %v77
    %v142 = vunpack.c.l.b16 %v78
    %v143 = vunpack.c.l.b16 %v79
    %v144 = vunpack.c.l.b16 %v80
    %v145 = vunpack.c.l.b16 %v81
    %v146 = vunpack.c.l.b16 %v82
    %v147 = vunpack.c.l.b16 %v83
    %v148 = vunpack.c.l.b16 %v84
    %v149 = vunpack.c.l.b16 %v85
    %v150 = vunpack.c.l.b16 %v86
    %v151 = vunpack.c.l.b16 %v87
    %v152 = vunpack.c.l.b16 %v88
    %v153 = vunpack.c.l.b16 %v89
    %v154 = vunpack.c.l.b16 %v90
    %v155 = vunpack.c.l.b16 %v91
    %v156 = vunpack.c.l.b16 %v92
    %v157 = vunpack.c.l.b16 %v93
    %v158 = vunpack.c.l.b16 %v94
    %v159 = vunpack.c.l.b16 %v95
    %v160 = vunpack.c.l.b16 %v96
    %v161 = vunpack.c.l.b16 %v97
    %v162 = vunpack.c.l.b16 %v98
    %v163 = vpack.c.b16 %v132, %v131
    %v164 = vpack.c.b16 %v134, %v133
    %v165 = vpack.c.b16 %v136, %v135
    %v166 = vpack.c.b16 %v138, %v137
    %v167 = vpack.c.b16 %v140, %v139
    %v168 = vpack.c.b16 %v142, %v141
    %v169 = vpack.c.b16 %v144, %v143
    %v170 = vpack.c.b16 %v146, %v145
    %v171 = vpack.c.b16 %v148, %v147
    %v172 = vpack.c.b16 %v150, %v149
    %v173 = vpack.c.b16 %v152, %v151
    %v174 = vpack.c.b16 %v154, %v153
    %v175 = vpack.c.b16 %v156, %v155
    %v176 = vpack.c.b16 %v158, %v157
    %v177 = vpack.c.b16 %v160, %v159
    %v178 = vpack.c.b16 %v162, %v161
    %195 = vmatpush.bf16.msra.mxu0 %v170
    %196 = vmatpush.bf16.msra.mxu0 %v169
    %197 = vmatpush.bf16.msra.mxu0 %v168
    %198 = vmatpush.bf16.msra.mxu0 %v167
    %199 = vmatpush.bf16.msra.mxu0 %v166
    %200 = vmatpush.bf16.msra.mxu0 %v165
    %201 = vmatpush.bf16.msra.mxu0 %v164
    %202 = vmatpush.bf16.msra.mxu0 %v163
    %203 = vmatmul.bf16.gmra.mxu0 %v65
    %v204 = vpop.f32.mrf.mxu0
    %v205 = vadd.f32 0.0, %v204
    %v206 = vpop.f32.mrf.mxu0
    %207 = vdwg.mxu0
    %208 = vmatpush.bf16.msra.mxu0 %v178
    %209 = vmatpush.bf16.msra.mxu0 %v177
    %210 = vmatpush.bf16.msra.mxu0 %v176
    %211 = vmatpush.bf16.msra.mxu0 %v175
    %212 = vmatpush.bf16.msra.mxu0 %v174
    %213 = vmatpush.bf16.msra.mxu0 %v173
    %214 = vmatpush.bf16.msra.mxu0 %v172
    %215 = vmatpush.bf16.msra.mxu0 %v171
    %216 = vmatmul.bf16.gmra.mxu0 %v66
    %v217 = vpop.f32.mrf.mxu0
    %v218 = vadd.f32 %v205, %v217
    %v219 = vpop.f32.mrf.mxu0
    %220 = vdwg.mxu0
    %221 = vst [vmem:[#allocation5] sm:$0xff] %v218
    // Predicated region
    $region14: #{tpu_custom_call.1} parent=1 // pred_check
      _
    $region15: #{tpu_custom_call.1} parent=1 // pred_check_branch
      %223 = sbr.rel (0) target = $region17
    $region16: #{tpu_custom_call.1} parent=1 // pred_region
      %225 = vsyncadd [#allocation4], 0
      %s227 = sshll.u32 [#allocation5], 4
      %s228 = int_to_ptr.vmem [resolvable:$true] %s227
      %s229 = sshll.u32 %s2, 4
      %s230 = int_to_ptr.hbm [resolvable:$true] %s229
      %232 = dma.vmem_to_hbm [thread:$0]  %s228, 128, %s230, [#allocation4]
    $region17: #{tpu_custom_call.1} parent=1 // pred_fallthru
      _
    // Predicated region
    $region18: #{tpu_custom_call.1} parent=1 // pred_check
      _
    $region19: #{tpu_custom_call.1} parent=1 // pred_check_branch
      %234 = sbr.rel (0) target = $region21
    $region20: #{tpu_custom_call.1} parent=1 // pred_region
      %236 = dma.done [#allocation4], 128
    $region21: #{tpu_custom_call.1} parent=1 // pred_fallthru
      _
    %237 = vsyncpa [#allocation3], 1
    %238 = vsyncpa [#allocation4], 1

</llo_original>
